<compile_context>
chip_gen: v7x
topology: tpu7x:2x2x1
jax: 0.10.0
libtpu: 0.0.40
codegen_flags: <defaults>
</compile_context>

<pallas_src>
import functools

import jax
import jax.numpy as jnp
from jax.experimental import pallas as pl
from jax.experimental.pallas import tpu as pltpu


def _sdpa_kernel(q_ref, k_ref, v_ref, o_ref, *, scale, dropout_p, seed):
    # Per-batch slabs (batch dim squeezed by the BlockSpec):
    #   q_ref: (Lq, D)   k_ref: (Lk, D)   v_ref: (Lk, Dv)   o_ref: (Lq, Dv)
    Lq = q_ref.shape[0]
    Lk = k_ref.shape[0]

    # Fold the compile-time scale into Q (cheaper than scaling the (Lq, Lk)
    # score matrix once Lk > D), then feed the MXU bf16 with f32 accumulation.
    q = (q_ref[...] * jnp.float32(scale)).astype(jnp.bfloat16)
    k = k_ref[...].astype(jnp.bfloat16)

    # scores = (scale * Q) @ K^T  — contract last dims directly (no XLU copy).
    s = jnp.einsum('qd,kd->qk', q, k, preferred_element_type=jnp.float32)

    # Numerically stable softmax over the last dim (exact divide).
    m = jnp.max(s, axis=-1, keepdims=True)
    e = jnp.exp(s - m)
    denom = jnp.sum(e, axis=-1, keepdims=True)
    inv = jnp.float32(1.0) / denom                      # (Lq, 1)

    if dropout_p > 0.0:
        # Fold the survivor rescale 1/(1-p) into the per-row normalizer so the
        # (Lq, Lk) path stays a single mul + select pass.
        inv = inv * jnp.float32(1.0 / (1.0 - dropout_p))

        # Counter-based keep-mask: murmur3-style integer hash of
        # (batch, row, col, seed) -> uint32; keep iff bits >= p * 2^32.
        thresh = min(int(round(float(dropout_p) * (1 << 32))), (1 << 32) - 1)
        b = pl.program_id(0).astype(jnp.uint32)
        row = jax.lax.broadcasted_iota(jnp.uint32, (Lq, Lk), 0)
        col = jax.lax.broadcasted_iota(jnp.uint32, (Lq, Lk), 1)
        x = (b * jnp.uint32(Lq * Lk)
             + row * jnp.uint32(Lk) + col
             + jnp.uint32((int(seed) * 0x9E3779B9) & 0xFFFFFFFF))
        x = x ^ (x >> 16)
        x = x * jnp.uint32(0x85EBCA6B)
        x = x ^ (x >> 13)
        x = x * jnp.uint32(0xC2B2AE35)
        x = x ^ (x >> 16)
        keep = x >= jnp.uint32(thresh)
        p = jnp.where(keep, e * inv, jnp.float32(0.0))  # (Lq, Lk)
    else:
        p = e * inv

    # output = (dropped) attention probs @ V  (bf16 MXU, f32 accumulation).
    v = v_ref[...].astype(jnp.bfloat16)
    o_ref[...] = jnp.einsum('qk,kd->qd', p.astype(jnp.bfloat16), v,
                            preferred_element_type=jnp.float32)


def sdpa_pallas(query, key, value, scale_factor, dropout_p=0.3, seed=0):
    B, Lq, D = query.shape
    Bk, Lk, Dk = key.shape
    Bv, Lkv, Dv = value.shape
    assert B == Bk == Bv and D == Dk and Lk == Lkv

    kernel = functools.partial(
        _sdpa_kernel,
        scale=float(scale_factor),
        dropout_p=float(dropout_p),
        seed=int(seed),
    )

    return pl.pallas_call(
        kernel,
        out_shape=jax.ShapeDtypeStruct((B, Lq, Dv), jnp.float32),
        grid=(B,),                                     # one batch per step
        in_specs=[
            pl.BlockSpec((None, Lq, D),  lambda b: (b, 0, 0)),
            pl.BlockSpec((None, Lk, D),  lambda b: (b, 0, 0)),
            pl.BlockSpec((None, Lk, Dv), lambda b: (b, 0, 0)),
        ],
        out_specs=pl.BlockSpec((None, Lq, Dv), lambda b: (b, 0, 0)),
        compiler_params=pltpu.CompilerParams(
            dimension_semantics=("parallel",)),        # megacore on v7x
    )(query, key, value)


if __name__ == "__main__":
    # Small shapes consistent with the module's forward:
    #   query (B, Lq, D), key (B, Lk, D), value (B, Lk, Dv)
    B, Lq, Lk, D, Dv = 2, 16, 16, 32, 32
    k0, k1, k2 = jax.random.split(jax.random.PRNGKey(0), 3)
    query = jax.random.normal(k0, (B, Lq, D), dtype=jnp.float32)
    key = jax.random.normal(k1, (B, Lk, D), dtype=jnp.float32)
    value = jax.random.normal(k2, (B, Lk, Dv), dtype=jnp.float32)
    scale_factor = 1.0 / (D ** 0.5)

    # Correctness check with dropout disabled (dropout itself is stochastic).
    # The reference follows the same numeric recipe as the kernel: bf16 MXU
    # inputs with f32 accumulation.
    out_nodrop = jax.block_until_ready(
        sdpa_pallas(query, key, value, scale_factor, dropout_p=0.0))
    qs = (query * scale_factor).astype(jnp.bfloat16)
    s = jnp.einsum('bqd,bkd->bqk', qs, key.astype(jnp.bfloat16),
                   preferred_element_type=jnp.float32)
    probs = jax.nn.softmax(s, axis=-1)
    ref = jnp.einsum('bqk,bkd->bqd', probs.astype(jnp.bfloat16),
                     value.astype(jnp.bfloat16),
                     preferred_element_type=jnp.float32)
    assert jnp.allclose(out_nodrop, ref, atol=1e-2, rtol=1e-2)

    # Full forward with dropout_p=0.3 (training-mode dropout semantics).
    out = jax.block_until_ready(
        sdpa_pallas(query, key, value, scale_factor, dropout_p=0.3, seed=42))
    assert out.shape == (B, Lq, Dv)
    assert bool(jnp.all(jnp.isfinite(out)))

    print("KERNEL_OK")
</pallas_src>

<mosaic_0001>
module attributes {stable_mosaic.version = 11 : i64} {
  func.func @_sdpa_kernel(%arg0: i32, %arg1: memref<1x16x32xf32, #tpu.memory_space<vmem>>, %arg2: memref<1x16x32xf32, #tpu.memory_space<vmem>>, %arg3: memref<1x16x32xf32, #tpu.memory_space<vmem>>, %arg4: memref<1x16x32xf32, #tpu.memory_space<vmem>>) attributes {dimension_semantics = [#tpu.dimension_semantics<parallel>], iteration_bounds = array<i64: 2>, scalar_prefetch = 0 : i64, scratch_operands = 0 : i64, tpu.core_type = #tpu.core_type<tc>, window_params = [{transform_indices = @transform_0, window_bounds = array<i64: 1, 16, 32>}, {transform_indices = @transform_1, window_bounds = array<i64: 1, 16, 32>}, {transform_indices = @transform_2, window_bounds = array<i64: 1, 16, 32>}, {transform_indices = @transform_3, window_bounds = array<i64: 1, 16, 32>}]} {
    %c0 = arith.constant 0 : index
    %c0_0 = arith.constant 0 : index
    %c0_1 = arith.constant 0 : index
    %0 = vector.load %arg1[%c0, %c0_0, %c0_1] : memref<1x16x32xf32, #tpu.memory_space<vmem>>, vector<1x16x32xf32>
    %1 = vector.shape_cast %0 : vector<1x16x32xf32> to vector<16x32xf32>
    %cst = arith.constant 0.176776692 : f32
    %2 = vector.broadcast %cst : f32 to vector<16x32xf32>
    %3 = arith.mulf %1, %2 : vector<16x32xf32>
    %4 = arith.truncf %3 : vector<16x32xf32> to vector<16x32xbf16>
    %c0_2 = arith.constant 0 : index
    %c0_3 = arith.constant 0 : index
    %c0_4 = arith.constant 0 : index
    %5 = vector.load %arg2[%c0_2, %c0_3, %c0_4] : memref<1x16x32xf32, #tpu.memory_space<vmem>>, vector<1x16x32xf32>
    %6 = vector.shape_cast %5 : vector<1x16x32xf32> to vector<16x32xf32>
    %7 = arith.truncf %6 : vector<16x32xf32> to vector<16x32xbf16>
    "tpu.trace_start"() <{level = 10 : i32, message = "qd,kd->qk"}> : () -> ()
    %cst_5 = arith.constant dense<0.000000e+00> : vector<16x16xf32>
    %8 = tpu.matmul %4, %7, %cst_5 {dimension_numbers = #tpu.dot_dimension_numbers<[1], [1], [0], [0], [0, 0, 1, 0], [], []>} : vector<16x32xbf16>, vector<16x32xbf16>, vector<16x16xf32> -> vector<16x16xf32>
    "tpu.trace_stop"() : () -> ()
    %cst_6 = arith.constant dense<0xFF800000> : vector<16xf32>
    %9 = vector.multi_reduction <maximumf>, %8, %cst_6 [1] : vector<16x16xf32> to vector<16xf32>
    %10 = vector.shape_cast %9 : vector<16xf32> to vector<16x1xf32>
    %11 = vector.broadcast %10 : vector<16x1xf32> to vector<16x16xf32>
    %12 = arith.subf %8, %11 : vector<16x16xf32>
    %13 = math.exp %12 : vector<16x16xf32>
    %cst_7 = arith.constant dense<0.000000e+00> : vector<16xf32>
    %14 = vector.multi_reduction <add>, %13, %cst_7 [1] : vector<16x16xf32> to vector<16xf32>
    %15 = vector.shape_cast %14 : vector<16xf32> to vector<16x1xf32>
    %cst_8 = arith.constant 1.000000e+00 : f32
    %16 = vector.broadcast %cst_8 : f32 to vector<16x1xf32>
    %17 = arith.divf %16, %15 : vector<16x1xf32>
    %18 = vector.broadcast %17 : vector<16x1xf32> to vector<16x16xf32>
    %19 = arith.mulf %13, %18 : vector<16x16xf32>
    %c0_9 = arith.constant 0 : index
    %c0_10 = arith.constant 0 : index
    %c0_11 = arith.constant 0 : index
    %20 = vector.load %arg3[%c0_9, %c0_10, %c0_11] : memref<1x16x32xf32, #tpu.memory_space<vmem>>, vector<1x16x32xf32>
    %21 = vector.shape_cast %20 : vector<1x16x32xf32> to vector<16x32xf32>
    %22 = arith.truncf %21 : vector<16x32xf32> to vector<16x32xbf16>
    %23 = arith.truncf %19 : vector<16x16xf32> to vector<16x16xbf16>
    "tpu.trace_start"() <{level = 10 : i32, message = "qk,kd->qd"}> : () -> ()
    %cst_12 = arith.constant dense<0.000000e+00> : vector<16x32xf32>
    %24 = tpu.matmul %23, %22, %cst_12 {dimension_numbers = #tpu.dot_dimension_numbers<[1], [0], [0], [1], [0, 0, 1, 1], [], []>} : vector<16x16xbf16>, vector<16x32xbf16>, vector<16x32xf32> -> vector<16x32xf32>
    "tpu.trace_stop"() : () -> ()
    %c0_13 = arith.constant 0 : index
    %c0_14 = arith.constant 0 : index
    %c0_15 = arith.constant 0 : index
    %25 = vector.load %arg4[%c0_13, %c0_14, %c0_15] : memref<1x16x32xf32, #tpu.memory_space<vmem>>, vector<1x16x32xf32>
    %26 = vector.shape_cast %25 : vector<1x16x32xf32> to vector<16x32xf32>
    %27 = vector.shape_cast %24 : vector<16x32xf32> to vector<1x16x32xf32>
    tpu.vector_store %arg4[%c0_13, %c0_14, %c0_15], %27 {strides = array<i32>} : memref<1x16x32xf32, #tpu.memory_space<vmem>>, vector<1x16x32xf32>,
    return
  }
  func.func @transform_0(%arg0: i32) -> (i32, i32, i32) {
    %c0_i32 = arith.constant 0 : i32
    %c0_i32_0 = arith.constant 0 : i32
    %c0_i32_1 = arith.constant 0 : i32
    return %arg0, %c0_i32, %c0_i32_0 : i32, i32, i32
  }
  func.func @transform_1(%arg0: i32) -> (i32, i32, i32) {
    %c0_i32 = arith.constant 0 : i32
    %c0_i32_0 = arith.constant 0 : i32
    %c0_i32_1 = arith.constant 0 : i32
    return %arg0, %c0_i32, %c0_i32_0 : i32, i32, i32
  }
  func.func @transform_2(%arg0: i32) -> (i32, i32, i32) {
    %c0_i32 = arith.constant 0 : i32
    %c0_i32_0 = arith.constant 0 : i32
    %c0_i32_1 = arith.constant 0 : i32
    return %arg0, %c0_i32, %c0_i32_0 : i32, i32, i32
  }
  func.func @transform_3(%arg0: i32) -> (i32, i32, i32) {
    %c0_i32 = arith.constant 0 : i32
    %c0_i32_0 = arith.constant 0 : i32
    %c0_i32_1 = arith.constant 0 : i32
    return %arg0, %c0_i32, %c0_i32_0 : i32, i32, i32
  }
}

</mosaic_0001>

<llo_original>
// kernel: tpu_custom_call.1
$region0: #{tpu_custom_call.1}
  #allocation0 [shape = 'u32[]', space=smem, size = 0x4, offset = 0x4, fixed_abs, tag = 'smem constant byte address 0x4 - core index']
  #allocation1 [shape = 'u32[144,128]{1,0:T(1,128)}', space=vmem, size = 0x12000, scoped, tag = 'internal scratch']
  %s0 = inlined_call_operand.hbm [shape: f32[2,16,32], index: 0, kind: input, shape index: {}]
  %s1 = inlined_call_operand.hbm [shape: f32[2,16,32], index: 1, kind: input, shape index: {}]
  %s2 = inlined_call_operand.hbm [shape: f32[2,16,32], index: 2, kind: input, shape index: {}]
  %s3 = inlined_call_operand.hbm [shape: f32[2,16,32], index: 3, kind: output, shape index: {}]
  %s4 = sld [smem:[#allocation0]]
  $region57: #{tpu_custom_call.1} parent=0
    _
  %s6 = ssub.s32 1, %s4
  %s7 = scalar_select 0, %s6, %s4
  $region1: #{tpu_custom_call.1} parent=0
    #allocation2 [shape = 'u8[16384]{0}', space=vmem, size = 0x4000, scoped, tag = 'input window, operand 0']
    #allocation3 [shape = 's32[2]{0}', space=sflag, size = 0x8, scoped, tag = 'scoped memory for tpu_custom_call.1']
    #allocation4 [shape = 's32[2]{0}', space=sflag, size = 0x8, scoped, tag = 'scoped memory for tpu_custom_call.1']
    #allocation5 [shape = 'u8[16384]{0}', space=vmem, size = 0x4000, scoped, tag = 'input window, operand 1']
    #allocation6 [shape = 's32[2]{0}', space=sflag, size = 0x8, scoped, tag = 'scoped memory for tpu_custom_call.1']
    #allocation7 [shape = 'u8[16384]{0}', space=vmem, size = 0x4000, scoped, tag = 'input window, operand 2']
    #allocation8 [shape = 'u8[16384]{0}', space=vmem, size = 0x4000, scoped, tag = 'output window, operand 0']
    %8 = vsyncpa [#allocation3], 0
    %s9 = scalar_lea.sflag [#allocation3], 1
    %10 = vsyncpa %s9, 0
    %11 = vsyncpa [#allocation6], 0
    %s12 = scalar_lea.sflag [#allocation6], 1
    %13 = vsyncpa %s12, 0
    %14 = vsyncpa [#allocation4], 0
    %s15 = scalar_lea.sflag [#allocation4], 1
    %16 = vsyncpa %s15, 0
    loop: start=0, step=1, limit=4
    $region2: #{tpu_custom_call.1} parent=1 // loop_pre_header
      _
    $region3: #{tpu_custom_call.1} parent=1 // loop_header
      %s18 = sphi 0, %s22
      %p19 = scmp.ge.s32.totalorder %s18, 4
      %s28 = sphi 0, %s30
      %s31 = sphi 0, %s28
      %s32 = sphi 0, %s31
      %s48 = sphi 0, %s32
      %s54 = sphi 0, %s56
      %s57 = sphi 0, %s54
      %s58 = sphi 0, %s57
      %s74 = sphi 0, %s58
      %s80 = sphi 0, %s82
      %s83 = sphi 0, %s80
      %s84 = sphi 0, %s83
      %s100 = sphi 0, %s84
      %s106 = sphi 0, %s108
      %s109 = sphi 0, %s106
      %s110 = sphi 0, %s109
      %s126 = sphi 0, %s110
    $region4: #{tpu_custom_call.1} parent=1 // loop_header_branch
      %21 = sbr.rel (%p19) target = $region8
    $region5: #{tpu_custom_call.1} parent=1 // loop_body
      %s23 = ssub.s32 %s18, 1
      %s24 = ssub.s32 %s18, 2
      %s25 = sadd.s32 %s18, 1
      %s26 = ssub.s32 %s18, %s25
      %p27 = scmp.eq.s32.totalorder %s26, 0
      %s29 = sadd.s32 %s28, 1
      %s30 = scalar_select %p27, %s28, %s29
      %p33 = pneg %p27
      %p34 = scmp.eq.s32.totalorder %s18, 1
      %p35 = por %p33, %p34
      %p36 = scmp.ne.s32.totalorder %s28, %s31
      %p37 = scmp.eq.s32.totalorder %s18, 0
      %p38 = por %p36, %p37
      %p39 = scmp.ne.s32.totalorder %s28, %s31
      %p40 = scmp.eq.s32.totalorder %s23, 1
      %p41 = por %p39, %p40
      %p42 = scmp.ne.s32.totalorder %s31, %s32
      %p43 = scmp.eq.s32.totalorder %s23, 0
      %p44 = por %p42, %p43
      %p45 = scmp.ne.s32.totalorder %s31, %s32
      %p46 = scmp.eq.s32.totalorder %s24, 1
      %p47 = por %p45, %p46
      %p49 = scmp.ne.s32.totalorder %s32, %s48
      %p50 = scmp.eq.s32.totalorder %s24, 0
      %p51 = por %p49, %p50
      %s52 = ssub.s32 %s18, %s25
      %p53 = scmp.eq.s32.totalorder %s52, 0
      %s55 = sadd.s32 %s54, 1
      %s56 = scalar_select %p53, %s54, %s55
      %p59 = pneg %p53
      %p60 = scmp.eq.s32.totalorder %s18, 1
      %p61 = por %p59, %p60
      %p62 = scmp.ne.s32.totalorder %s54, %s57
      %p63 = scmp.eq.s32.totalorder %s18, 0
      %p64 = por %p62, %p63
      %p65 = scmp.ne.s32.totalorder %s54, %s57
      %p66 = scmp.eq.s32.totalorder %s23, 1
      %p67 = por %p65, %p66
      %p68 = scmp.ne.s32.totalorder %s57, %s58
      %p69 = scmp.eq.s32.totalorder %s23, 0
      %p70 = por %p68, %p69
      %p71 = scmp.ne.s32.totalorder %s57, %s58
      %p72 = scmp.eq.s32.totalorder %s24, 1
      %p73 = por %p71, %p72
      %p75 = scmp.ne.s32.totalorder %s58, %s74
      %p76 = scmp.eq.s32.totalorder %s24, 0
      %p77 = por %p75, %p76
      %s78 = ssub.s32 %s18, %s25
      %p79 = scmp.eq.s32.totalorder %s78, 0
      %s81 = sadd.s32 %s80, 1
      %s82 = scalar_select %p79, %s80, %s81
      %p85 = pneg %p79
      %p86 = scmp.eq.s32.totalorder %s18, 1
      %p87 = por %p85, %p86
      %p88 = scmp.ne.s32.totalorder %s80, %s83
      %p89 = scmp.eq.s32.totalorder %s18, 0
      %p90 = por %p88, %p89
      %p91 = scmp.ne.s32.totalorder %s80, %s83
      %p92 = scmp.eq.s32.totalorder %s23, 1
      %p93 = por %p91, %p92
      %p94 = scmp.ne.s32.totalorder %s83, %s84
      %p95 = scmp.eq.s32.totalorder %s23, 0
      %p96 = por %p94, %p95
      %p97 = scmp.ne.s32.totalorder %s83, %s84
      %p98 = scmp.eq.s32.totalorder %s24, 1
      %p99 = por %p97, %p98
      %p101 = scmp.ne.s32.totalorder %s84, %s100
      %p102 = scmp.eq.s32.totalorder %s24, 0
      %p103 = por %p101, %p102
      %s104 = ssub.s32 %s18, %s25
      %p105 = scmp.eq.s32.totalorder %s104, 0
      %s107 = sadd.s32 %s106, 1
      %s108 = scalar_select %p105, %s106, %s107
      %p111 = pneg %p105
      %p112 = scmp.eq.s32.totalorder %s18, 1
      %p113 = por %p111, %p112
      %p114 = scmp.ne.s32.totalorder %s106, %s109
      %p115 = scmp.eq.s32.totalorder %s18, 0
      %p116 = por %p114, %p115
      %p117 = scmp.ne.s32.totalorder %s106, %s109
      %p118 = scmp.eq.s32.totalorder %s23, 1
      %p119 = por %p117, %p118
      %p120 = scmp.ne.s32.totalorder %s109, %s110
      %p121 = scmp.eq.s32.totalorder %s23, 0
      %p122 = por %p120, %p121
      %p123 = scmp.ne.s32.totalorder %s109, %s110
      %p124 = scmp.eq.s32.totalorder %s24, 1
      %p125 = por %p123, %p124
      %p127 = scmp.ne.s32.totalorder %s110, %s126
      %p128 = scmp.eq.s32.totalorder %s24, 0
      %p129 = por %p127, %p128
      %p130 = scmp.le.s32.totalorder 1, %s18
      %p131 = scmp.lt.s32.totalorder %s18, 3
      %p132 = pnand %p130, %p131
      %p133 = pneg %p132
      // Predicated region
      $region9: #{tpu_custom_call.1} parent=5 // pred_check
        _
      $region10: #{tpu_custom_call.1} parent=5 // pred_check_branch
        %135 = sbr.rel (%p132) target = $region12
      $region11: #{tpu_custom_call.1} parent=5 // pred_region
        %s136 = ssub.s32 %s18, 1
      $region12: #{tpu_custom_call.1} parent=5 // pred_fallthru
        _
      %p137 = scmp.lt.s32.totalorder %s18, 2
      // Predicated region
      $region13: #{tpu_custom_call.1} parent=5 // pred_check
        %p138 = pneg %p137
      $region14: #{tpu_custom_call.1} parent=5 // pred_check_branch
        %140 = sbr.rel (%p138) target = $region16
      $region15: #{tpu_custom_call.1} parent=5 // pred_region
        // Predicated region
        $region17: #{tpu_custom_call.1} parent=15 // pred_check
          %p141 = pneg %p38
        $region18: #{tpu_custom_call.1} parent=15 // pred_check_branch
          %143 = sbr.rel (%p141) target = $region20
        $region19: #{tpu_custom_call.1} parent=15 // pred_region
          %s144 = sand.u32 %s28, 1
          %s145 = scalar_lea.sflag [#allocation3], %s144
          %s146 = sand.u32 %s28, 1
          %s147 = smul.addr %s146, 16
          %s148 = scalar_lea.vmem [#allocation2], %s147
          %s150 = ssub.s32 256, 256
          %151 = vsyncadd %s145, %s150
          %s152 = smul.addr %s18, 2
          %s153 = smul.addr %s152, 128
          %s154 = scalar_lea.hbm %s0, %s153
          %s155 = sshll.u32 %s148, 4
          %s156 = int_to_ptr.vmem [resolvable:$true] %s155
          %161 = dma.hbm_to_vmem [thread:$0]  %s154, 256, %s156, %s145, 128, 128, 8
        $region20: #{tpu_custom_call.1} parent=15 // pred_fallthru
          _
        // Predicated region
        $region21: #{tpu_custom_call.1} parent=15 // pred_check
          %p162 = pneg %p64
        $region22: #{tpu_custom_call.1} parent=15 // pred_check_branch
          %164 = sbr.rel (%p162) target = $region24
        $region23: #{tpu_custom_call.1} parent=15 // pred_region
          %s165 = sand.u32 %s18, 1
          %s166 = scalar_lea.sflag [#allocation6], %s165
          %s167 = sand.u32 %s54, 1
          %s168 = smul.addr %s167, 16
          %s169 = scalar_lea.vmem [#allocation5], %s168
          %s171 = ssub.s32 256, 256
          %172 = vsyncadd %s166, %s171
          %s173 = smul.addr %s18, 2
          %s174 = smul.addr %s173, 128
          %s175 = scalar_lea.hbm %s1, %s174
          %s176 = sshll.u32 %s169, 4
          %s177 = int_to_ptr.vmem [resolvable:$true] %s176
          %182 = dma.hbm_to_vmem [thread:$0]  %s175, 256, %s177, %s166, 128, 128, 8
        $region24: #{tpu_custom_call.1} parent=15 // pred_fallthru
          _
        // Predicated region
        $region25: #{tpu_custom_call.1} parent=15 // pred_check
          %p183 = pneg %p90
        $region26: #{tpu_custom_call.1} parent=15 // pred_check_branch
          %185 = sbr.rel (%p183) target = $region28
        $region27: #{tpu_custom_call.1} parent=15 // pred_region
          %s186 = sand.u32 %s18, 1
          %s187 = scalar_lea.sflag [#allocation6], %s186
          %s188 = sand.u32 %s80, 1
          %s189 = smul.addr %s188, 16
          %s190 = scalar_lea.vmem [#allocation7], %s189
          %s192 = ssub.s32 256, 256
          %193 = vsyncadd %s187, %s192
          %s194 = smul.addr %s18, 2
          %s195 = smul.addr %s194, 128
          %s196 = scalar_lea.hbm %s2, %s195
          %s197 = sshll.u32 %s190, 4
          %s198 = int_to_ptr.vmem [resolvable:$true] %s197
          %203 = dma.hbm_to_vmem [thread:$0]  %s196, 256, %s198, %s187, 128, 128, 8
        $region28: #{tpu_custom_call.1} parent=15 // pred_fallthru
          _
      $region16: #{tpu_custom_call.1} parent=5 // pred_fallthru
        _
      %p204 = scmp.le.s32.totalorder 1, %s18
      %p205 = scmp.lt.s32.totalorder %s18, 3
      %p206 = pnand %p204, %p205
      %p207 = pneg %p206
      // Predicated region
      $region29: #{tpu_custom_call.1} parent=5 // pred_check
        _
      $region30: #{tpu_custom_call.1} parent=5 // pred_check_branch
        %209 = sbr.rel (%p206) target = $region32
      $region31: #{tpu_custom_call.1} parent=5 // pred_region
        %s210 = ssub.s32 %s18, 1
        %s211 = sand.u32 %s31, 1
        %s212 = scalar_lea.sflag [#allocation3], %s211
        %s213 = sand.u32 %s31, 1
        %s214 = smul.addr %s213, 16
        %s215 = scalar_lea.vmem [#allocation2], %s214
        // Predicated region
        $region33: #{tpu_custom_call.1} parent=31 // pred_check
          %p216 = pneg %p44
        $region34: #{tpu_custom_call.1} parent=31 // pred_check_branch
          %218 = sbr.rel (%p216) target = $region36
        $region35: #{tpu_custom_call.1} parent=31 // pred_region
          %219 = dma.done %s212, 256
        $region36: #{tpu_custom_call.1} parent=31 // pred_fallthru
          _
        %s220 = sand.u32 %s23, 1
        %s221 = scalar_lea.sflag [#allocation6], %s220
        %s222 = sand.u32 %s57, 1
        %s223 = smul.addr %s222, 16
        %s224 = scalar_lea.vmem [#allocation5], %s223
        // Predicated region
        $region37: #{tpu_custom_call.1} parent=31 // pred_check
          %p225 = pneg %p70
        $region38: #{tpu_custom_call.1} parent=31 // pred_check_branch
          %227 = sbr.rel (%p225) target = $region40
        $region39: #{tpu_custom_call.1} parent=31 // pred_region
          %228 = dma.done %s221, 256
        $region40: #{tpu_custom_call.1} parent=31 // pred_fallthru
          _
        %s229 = sand.u32 %s23, 1
        %s230 = scalar_lea.sflag [#allocation6], %s229
        %s231 = sand.u32 %s83, 1
        %s232 = smul.addr %s231, 16
        %s233 = scalar_lea.vmem [#allocation7], %s232
        // Predicated region
        $region41: #{tpu_custom_call.1} parent=31 // pred_check
          %p234 = pneg %p96
        $region42: #{tpu_custom_call.1} parent=31 // pred_check_branch
          %236 = sbr.rel (%p234) target = $region44
        $region43: #{tpu_custom_call.1} parent=31 // pred_region
          %237 = dma.done %s230, 256
        $region44: #{tpu_custom_call.1} parent=31 // pred_fallthru
          _
        %s238 = sand.u32 %s31, 1
        %s239 = scalar_lea.sflag [#allocation3], %s238
        %s240 = sand.u32 %s31, 1
        %s241 = smul.addr %s240, 16
        %s242 = scalar_lea.vmem [#allocation2], %s241
        %p243 = pneg %p44
        %p244 = pneg %p41
        %s245 = sand.u32 %s23, 1
        %s246 = scalar_lea.sflag [#allocation6], %s245
        %s247 = sand.u32 %s57, 1
        %s248 = smul.addr %s247, 16
        %s249 = scalar_lea.vmem [#allocation5], %s248
        %p250 = pneg %p70
        %p251 = pneg %p67
        %s252 = sand.u32 %s23, 1
        %s253 = scalar_lea.sflag [#allocation6], %s252
        %s254 = sand.u32 %s83, 1
        %s255 = smul.addr %s254, 16
        %s256 = scalar_lea.vmem [#allocation7], %s255
        %p257 = pneg %p96
        %p258 = pneg %p93
        %p259 = pneg %p122
        %p260 = pneg %p119
        %s261 = sand.u32 %s109, 1
        %s262 = scalar_lea.sflag [#allocation4], %s261
        %s263 = sand.u32 %s109, 1
        %s264 = smul.addr %s263, 16
        %s265 = scalar_lea.vmem [#allocation8], %s264
        %v267 = vld [vmem:[%s215] sm:$0xff]
        %v268 = vld [vmem:[%s215 + $0x8] sm:$0xff]
        %v269 = vmul.f32 %v267, 0.17677669
        %v270 = vmul.f32 %v268, 0.17677669
        %v271 = vpack.c.bf16 %v270, %v269
        %v272 = vld [vmem:[%s224] sm:$0xff]
        %v273 = vld [vmem:[%s224 + $0x8] sm:$0xff]
        %v274 = vpack.c.bf16 %v273, %v272
        %vm275 = vcmask 261120
        %v277 = vsel %vm275, %v271, 0
        %v280 = vsel %vm275, %v274, 0
        %282 = vmatprep.subr.bf16.mxu0 0
        %283 = vmatpush1.bf16.xpose.msra.mxu0 %v280
        %284 = vmatprep.subr.bf16.mxu0 0
        %285 = vmatpush1.bf16.xpose.msra.mxu0 0
        %286 = vmatprep.subr.bf16.mxu0 0
        %287 = vmatpush1.bf16.xpose.msra.mxu0 0
        %288 = vmatprep.subr.bf16.mxu0 0
        %289 = vmatpush1.bf16.xpose.msra.mxu0 0
        %290 = vmatprep.subr.bf16.mxu0 0
        %291 = vmatpush1.bf16.xpose.msra.mxu0 0
        %292 = vmatprep.subr.bf16.mxu0 0
        %293 = vmatpush1.bf16.xpose.msra.mxu0 0
        %294 = vmatprep.subr.bf16.mxu0 0
        %295 = vmatpush1.bf16.xpose.msra.mxu0 0
        %296 = vmatprep.subr.bf16.mxu0 0
        %297 = vmatpush1.bf16.xpose.msra.mxu0 0
        %298 = vmatprep.subr.bf16.mxu0 0
        %299 = vmatpush1.bf16.xpose.msra.mxu0 0
        %300 = vmatprep.subr.bf16.mxu0 0
        %301 = vmatpush1.bf16.xpose.msra.mxu0 0
        %302 = vmatprep.subr.bf16.mxu0 0
        %303 = vmatpush1.bf16.xpose.msra.mxu0 0
        %304 = vmatprep.subr.bf16.mxu0 0
        %305 = vmatpush1.bf16.xpose.msra.mxu0 0
        %306 = vmatprep.subr.bf16.mxu0 0
        %307 = vmatpush1.bf16.xpose.msra.mxu0 0
        %308 = vmatprep.subr.bf16.mxu0 0
        %309 = vmatpush1.bf16.xpose.msra.mxu0 0
        %310 = vmatprep.subr.bf16.mxu0 0
        %311 = vmatpush1.bf16.xpose.msra.mxu0 0
        %312 = vmatprep.subr.bf16.mxu0 0
        %313 = vmatpush1.bf16.xpose.msra.mxu0 0
        %314 = vmatprep.mubr.bf16.mxu0 0
        %315 = vmatmul.mubr.bf16.gmra.mrb[0].mxu0 %v277
        %v316 = vpop.f32.mrb[0].mxu0
        %v317 = vadd.f32 0.0, %v316
        %v318 = vpop.f32.mrb[0].mxu0
        %v319 = vpop.f32.mrb[0].mxu0
        %v320 = vadd.f32 0.0, %v319
        %v321 = vpop.f32.mrb[0].mxu0
        %322 = vdwg.mxu0
        %vm323 = vcmask 130048
        %v324 = vsel %vm323, %v317, -inf
        %325 = vmax.xlane.f32.xlu0 %v324
        %v326 = vpop.xlane.xlu0 %325
        %v327 = vsel %vm323, %v320, -inf
        %328 = vmax.xlane.f32.xlu0 %v327
        %v329 = vpop.xlane.xlu0 %328
        %v330 = vsub.f32 %v317, %v326
        %v331 = vsub.f32 %v320, %v329
        %v332 = vmul.f32 %v330, 1.442695
        %v333 = vpow.pop %v332
        %v334 = vmul.f32 %v331, 1.442695
        %v335 = vpow.pop %v334
        %v336 = vsel %vm323, %v333, 0.0
        %337 = vadd.xlane.f32.xlu0 %v336
        %v338 = vpop.xlane.xlu0 %337
        %v339 = vsel %vm323, %v335, 0.0
        %340 = vadd.xlane.f32.xlu0 %v339
        %v341 = vpop.xlane.xlu0 %340
        %v342 = vrcp.pop %v338
        %v343 = vmul.f32 1.0, %v342
        %v344 = vrcp.pop %v341
        %v345 = vmul.f32 1.0, %v344
        %v346 = vmul.f32 %v333, %v343
        %v347 = vmul.f32 %v335, %v345
        %v348 = vld [vmem:[%s233] sm:$0xff]
        %v349 = vld [vmem:[%s233 + $0x8] sm:$0xff]
        %v350 = vpack.c.bf16 %v349, %v348
        %v351 = vpack.c.bf16 %v347, %v346
        %v353 = vsel %vm323, %v351, 0
        %355 = vmatprep.subr.bf16.mxu0 0
        %356 = vmatpush1.bf16.msra.mxu0 %v350
        %357 = vmatprep.subr.bf16.mxu0 0
        %358 = vmatpush1.bf16.msra.mxu0 0
        %359 = vmatprep.subr.bf16.mxu0 0
        %360 = vmatpush1.bf16.msra.mxu0 0
        %361 = vmatprep.subr.bf16.mxu0 0
        %362 = vmatpush1.bf16.msra.mxu0 0
        %363 = vmatprep.subr.bf16.mxu0 0
        %364 = vmatpush1.bf16.msra.mxu0 0
        %365 = vmatprep.subr.bf16.mxu0 0
        %366 = vmatpush1.bf16.msra.mxu0 0
        %367 = vmatprep.subr.bf16.mxu0 0
        %368 = vmatpush1.bf16.msra.mxu0 0
        %369 = vmatprep.subr.bf16.mxu0 0
        %370 = vmatpush1.bf16.msra.mxu0 0
        %371 = vmatprep.subr.bf16.mxu0 0
        %372 = vmatpush1.bf16.msra.mxu0 0
        %373 = vmatprep.subr.bf16.mxu0 0
        %374 = vmatpush1.bf16.msra.mxu0 0
        %375 = vmatprep.subr.bf16.mxu0 0
        %376 = vmatpush1.bf16.msra.mxu0 0
        %377 = vmatprep.subr.bf16.mxu0 0
        %378 = vmatpush1.bf16.msra.mxu0 0
        %379 = vmatprep.subr.bf16.mxu0 0
        %380 = vmatpush1.bf16.msra.mxu0 0
        %381 = vmatprep.subr.bf16.mxu0 0
        %382 = vmatpush1.bf16.msra.mxu0 0
        %383 = vmatprep.subr.bf16.mxu0 0
        %384 = vmatpush1.bf16.msra.mxu0 0
        %385 = vmatprep.subr.bf16.mxu0 0
        %386 = vmatpush1.bf16.msra.mxu0 0
        %387 = vmatprep.mubr.bf16.mxu0 0
        %388 = vmatmul.mubr.bf16.gmra.mrb[0].mxu0 %v353
        %v389 = vpop.f32.mrb[0].mxu0
        %v390 = vadd.f32 0.0, %v389
        %v391 = vpop.f32.mrb[0].mxu0
        %v392 = vpop.f32.mrb[0].mxu0
        %v393 = vadd.f32 0.0, %v392
        %v394 = vpop.f32.mrb[0].mxu0
        %395 = vdwg.mxu0
        %396 = vst.msk [vmem:[%s265] sm:$0xff] %vm275, %v390
        %397 = vst.msk [vmem:[%s265 + $0x8] sm:$0xff] %vm275, %v393
        %s398 = sand.u32 %s109, 1
        %s399 = scalar_lea.sflag [#allocation4], %s398
        %s400 = sand.u32 %s109, 1
        %s401 = smul.addr %s400, 16
        %s402 = scalar_lea.vmem [#allocation8], %s401
        // Predicated region
        $region45: #{tpu_custom_call.1} parent=31 // pred_check
          %p403 = pneg %p119
        $region46: #{tpu_custom_call.1} parent=31 // pred_check_branch
          %405 = sbr.rel (%p403) target = $region48
        $region47: #{tpu_custom_call.1} parent=31 // pred_region
          %s407 = ssub.s32 256, 256
          %408 = vsyncadd %s399, %s407
          %s409 = smul.addr %s23, 2
          %s410 = smul.addr %s409, 128
          %s411 = scalar_lea.hbm %s3, %s410
          %s412 = sshll.u32 %s402, 4
          %s413 = int_to_ptr.vmem [resolvable:$true] %s412
          %418 = dma.vmem_to_hbm [thread:$0]  %s413, 256, %s411, %s399, 128, 128, 8
        $region48: #{tpu_custom_call.1} parent=31 // pred_fallthru
          _
      $region32: #{tpu_custom_call.1} parent=5 // pred_fallthru
        _
      %p419 = scmp.le.s32.totalorder 2, %s18
      // Predicated region
      $region49: #{tpu_custom_call.1} parent=5 // pred_check
        %p420 = pneg %p419
      $region50: #{tpu_custom_call.1} parent=5 // pred_check_branch
        %422 = sbr.rel (%p420) target = $region52
      $region51: #{tpu_custom_call.1} parent=5 // pred_region
        %s423 = ssub.s32 %s18, 2
        // Predicated region
        $region53: #{tpu_custom_call.1} parent=51 // pred_check
          %p424 = pneg %p125
        $region54: #{tpu_custom_call.1} parent=51 // pred_check_branch
          %426 = sbr.rel (%p424) target = $region56
        $region55: #{tpu_custom_call.1} parent=51 // pred_region
          %s427 = sand.u32 %s110, 1
          %s428 = scalar_lea.sflag [#allocation4], %s427
          %s429 = sand.u32 %s110, 1
          %s430 = smul.addr %s429, 16
          %s431 = scalar_lea.vmem [#allocation8], %s430
          %432 = dma.done %s428, 256
        $region56: #{tpu_custom_call.1} parent=51 // pred_fallthru
          _
      $region52: #{tpu_custom_call.1} parent=5 // pred_fallthru
        _
    $region6: #{tpu_custom_call.1} parent=1 // loop_footer
      %s22 = sadd.s32 1, %s18
    $region7: #{tpu_custom_call.1} parent=1 // loop_footer_branch
      %17 = sbr.rel target = $region3
    $region8: #{tpu_custom_call.1} parent=1 // loop_exit
      _
    %433 = vsyncpa [#allocation3], 1
    %s434 = scalar_lea.sflag [#allocation3], 1
    %435 = vsyncpa %s434, 1
    %436 = vsyncpa [#allocation6], 1
    %s437 = scalar_lea.sflag [#allocation6], 1
    %438 = vsyncpa %s437, 1
    %439 = vsyncpa [#allocation4], 1
    %s440 = scalar_lea.sflag [#allocation4], 1
    %441 = vsyncpa %s440, 1

</llo_original>
